<compile_context>
chip_gen: v7x
topology: tpu7x:2x2x1
jax: 0.10.0
libtpu: 0.0.40
codegen_flags: <defaults>
</compile_context>

<pallas_src>
import functools

import jax
import jax.numpy as jnp
from jax.experimental import pallas as pl
from jax.experimental.pallas import tpu as pltpu


def hete_agg_kernel(self_ref, nb_ref, w_ref, q_ref, out_ref, *, alpha, mxu_bf16):
    tb, n, d = nb_ref.shape

    sv = self_ref[...].astype(jnp.float32)          # (tb, d)
    nb = nb_ref[...]                                # (tb, n, d)
    w = w_ref[...]                                  # (d, d)
    q = q_ref[...].astype(jnp.float32)              # (1, d)  lane-dense

    # Cast only the MXU operands; accumulate in f32.
    mm_dtype = jnp.bfloat16 if mxu_bf16 else jnp.float32
    nb_mm = nb.astype(mm_dtype)
    w_mm = w.astype(mm_dtype)

    # neighbor_message = neighbor_vector @ w   (MXU, f32 accumulation)
    msg = jnp.dot(
        nb_mm.reshape(tb * n, d), w_mm, preferred_element_type=jnp.float32
    ).reshape(tb, n, d)

    # attn_feat = h_node * neighbor_message  (h_node broadcast over N)
    attn_feat = sv[:, None, :] * msg

    # LeakyReLU(alpha)
    act = jnp.where(attn_feat > 0, attn_feat, alpha * attn_feat)

    # attn_score = <act, q>  — VPU multiply + XLU lane reduction instead of a
    # degenerate (x,128)@(128,1) MXU matmul.
    score = jnp.sum(act * q.reshape(1, 1, d), axis=-1)        # (tb, n)

    # Softmax over neighbors (N sits on lanes; with tiny N the padding is
    # accepted — this epilogue is a small fraction of the kernel).
    m = jnp.max(score, axis=-1, keepdims=True)
    e = jnp.exp(score - m)
    denom = jnp.sum(e, axis=-1, keepdims=True)
    attn = e * pl.reciprocal(denom, approx=True)              # (tb, n)

    # Aggregate: sum_n attn * neighbor_message -> (tb, d)
    agg = jnp.sum(attn[:, :, None] * msg, axis=1)

    out_ref[...] = agg.astype(out_ref.dtype)


def hete_aggregator(self_vectors, neighbor_vector, w, q, *, alpha=0.2,
                    tb=None, mxu_bf16=True):
    B, D = self_vectors.shape
    _, N, _ = neighbor_vector.shape

    itemsize = jnp.dtype(neighbor_vector.dtype).itemsize

    # --- choose batch tile: as large as VMEM comfortably allows ------------
    if tb is None:
        nb_budget = 4 * 1024 * 1024                 # bytes per neighbor buffer
        tb = max(8, nb_budget // (N * D * itemsize))
        tb = min(tb, 512, B)
    if tb < B:
        tb = max(8, (tb // 8) * 8)                  # sublane alignment
    tb = min(tb, B)
    grid = (pl.cdiv(B, tb),)                        # partial last block is OK

    # Lane-dense attention vector: (D, 1) -> (1, D).
    q_row = q.reshape(1, D)

    kernel = functools.partial(hete_agg_kernel, alpha=alpha, mxu_bf16=mxu_bf16)

    # --- VMEM budget: double-buffered I/O + in-kernel f32 temporaries ------
    nb_tile = tb * N * D * 4
    io_tile = 2 * (nb_tile + 2 * tb * D * 4 + D * D * 4 + D * 4)
    est = io_tile + 4 * nb_tile                     # msg / attn_feat / act temps
    vmem_limit = int(min(max(est, 32 * 1024 * 1024), 48 * 1024 * 1024))

    flops = 2 * B * N * D * D + 4 * B * N * D
    bytes_accessed = (B * D + B * N * D + D * D + D + B * D) * itemsize

    return pl.pallas_call(
        kernel,
        out_shape=jax.ShapeDtypeStruct((B, D), self_vectors.dtype),
        grid_spec=pltpu.PrefetchScalarGridSpec(
            num_scalar_prefetch=0,
            grid=grid,
            in_specs=[
                pl.BlockSpec((tb, D), lambda i: (i, 0)),        # self_vectors
                pl.BlockSpec((tb, N, D), lambda i: (i, 0, 0)),  # neighbor_vector
                pl.BlockSpec((D, D), lambda i: (0, 0)),         # w (broadcast)
                pl.BlockSpec((1, D), lambda i: (0, 0)),         # q row (broadcast)
            ],
            out_specs=pl.BlockSpec((tb, D), lambda i: (i, 0)),
        ),
        compiler_params=pltpu.CompilerParams(
            dimension_semantics=("parallel",),
            vmem_limit_bytes=vmem_limit,
        ),
        cost_estimate=pl.CostEstimate(
            flops=flops,
            transcendentals=B * N,
            bytes_accessed=bytes_accessed,
        ),
    )(self_vectors, neighbor_vector, w, q_row)


def reference(self_vectors, neighbor_vector, w, q, alpha=0.2):
    # Pure-JAX mirror of the PyTorch forward for verification.
    msg = jnp.einsum("bnd,de->bne", neighbor_vector, w)
    h = self_vectors[:, None, :] * msg
    act = jnp.where(h > 0, h, alpha * h)
    score = jnp.einsum("bnd,dk->bnk", act, q)[..., 0]
    attn = jax.nn.softmax(score, axis=-1)[..., None]
    return jnp.sum(attn * msg, axis=-2)


if __name__ == "__main__":
    B, N, D = 16, 8, 128
    leaky_alpha = 0.2

    key = jax.random.PRNGKey(0)
    k_self, k_nb, k_w, k_q = jax.random.split(key, 4)

    self_vectors = jax.random.normal(k_self, (B, D), dtype=jnp.float32)
    neighbor_vector = jax.random.normal(k_nb, (B, N, D), dtype=jnp.float32)

    # Deterministic parameter init (Xavier-uniform-like scaling).
    w = jax.random.uniform(
        k_w, (D, D), dtype=jnp.float32, minval=-1.0, maxval=1.0
    ) * (6.0 / (D + D)) ** 0.5
    q = jax.random.uniform(
        k_q, (D, 1), dtype=jnp.float32, minval=-1.0, maxval=1.0
    ) * (6.0 / (D + 1)) ** 0.5

    ref = reference(self_vectors, neighbor_vector, w, q, alpha=leaky_alpha)

    # f32-MXU path: tight check against the f32 reference.
    out_f32 = hete_aggregator(
        self_vectors, neighbor_vector, w, q, alpha=leaky_alpha, mxu_bf16=False
    )
    out_f32 = jax.block_until_ready(out_f32)
    assert out_f32.shape == (B, D)
    assert jnp.allclose(out_f32, ref, atol=5e-3, rtol=5e-3), "f32 path mismatch"

    # Default fast path (bf16 MXU operands): looser tolerance per review.
    out = hete_aggregator(self_vectors, neighbor_vector, w, q, alpha=leaky_alpha)
    out = jax.block_until_ready(out)
    assert out.shape == (B, D)
    assert jnp.allclose(out, ref, atol=5e-2, rtol=5e-2), "bf16 path mismatch"

    print("KERNEL_OK")
</pallas_src>

<mosaic_0001>
module attributes {stable_mosaic.version = 11 : i64} {
  func.func @hete_agg_kernel(%arg0: i32, %arg1: memref<16x128xf32, #tpu.memory_space<vmem>>, %arg2: memref<16x8x128xf32, #tpu.memory_space<vmem>>, %arg3: memref<128x128xf32, #tpu.memory_space<vmem>>, %arg4: memref<1x128xf32, #tpu.memory_space<vmem>>, %arg5: memref<16x128xf32, #tpu.memory_space<vmem>>) attributes {dimension_semantics = [#tpu.dimension_semantics<parallel>], iteration_bounds = array<i64: 1>, scalar_prefetch = 0 : i64, scratch_operands = 0 : i64, tpu.core_type = #tpu.core_type<tc>, window_params = [{transform_indices = @transform_0, window_bounds = array<i64: 16, 128>}, {transform_indices = @transform_1, window_bounds = array<i64: 16, 8, 128>}, {pipeline_mode = #tpu.pipeline_mode<synchronous>, transform_indices = @transform_2, window_bounds = array<i64: 128, 128>}, {pipeline_mode = #tpu.pipeline_mode<synchronous>, transform_indices = @transform_3, window_bounds = array<i64: 1, 128>}, {transform_indices = @transform_4, window_bounds = array<i64: 16, 128>}]} {
    %c0 = arith.constant 0 : index
    %c0_0 = arith.constant 0 : index
    %0 = vector.load %arg1[%c0, %c0_0] : memref<16x128xf32, #tpu.memory_space<vmem>>, vector<16x128xf32>
    %c0_1 = arith.constant 0 : index
    %c0_2 = arith.constant 0 : index
    %c0_3 = arith.constant 0 : index
    %1 = vector.load %arg2[%c0_1, %c0_2, %c0_3] : memref<16x8x128xf32, #tpu.memory_space<vmem>>, vector<16x8x128xf32>
    %c0_4 = arith.constant 0 : index
    %c0_5 = arith.constant 0 : index
    %2 = vector.load %arg3[%c0_4, %c0_5] : memref<128x128xf32, #tpu.memory_space<vmem>>, vector<128x128xf32>
    %c0_6 = arith.constant 0 : index
    %c0_7 = arith.constant 0 : index
    %3 = vector.load %arg4[%c0_6, %c0_7] : memref<1x128xf32, #tpu.memory_space<vmem>>, vector<1x128xf32>
    %4 = vector.shape_cast %1 : vector<16x8x128xf32> to vector<128x128xf32>
    %cst = arith.constant dense<0.000000e+00> : vector<128x128xf32>
    %5 = tpu.matmul %4, %2, %cst {dimension_numbers = #tpu.dot_dimension_numbers<[1], [0], [0], [1], [0, 0, 1, 1], [], []>} : vector<128x128xf32>, vector<128x128xf32>, vector<128x128xf32> -> vector<128x128xf32>
    %6 = vector.shape_cast %5 : vector<128x128xf32> to vector<16x8x128xf32>
    %7 = vector.shape_cast %0 : vector<16x128xf32> to vector<16x1x128xf32>
    %8 = vector.broadcast %7 : vector<16x1x128xf32> to vector<16x8x128xf32>
    %9 = arith.mulf %8, %6 : vector<16x8x128xf32>
    %cst_8 = arith.constant 0.000000e+00 : f32
    %10 = vector.broadcast %cst_8 : f32 to vector<16x8x128xf32>
    %11 = arith.cmpf ogt, %9, %10 : vector<16x8x128xf32>
    %cst_9 = arith.constant 2.000000e-01 : f32
    %12 = vector.broadcast %cst_9 : f32 to vector<16x8x128xf32>
    %13 = arith.mulf %12, %9 : vector<16x8x128xf32>
    %14 = arith.select %11, %9, %13 : vector<16x8x128xi1>, vector<16x8x128xf32>
    %15 = vector.shape_cast %3 : vector<1x128xf32> to vector<1x1x128xf32>
    %16 = vector.broadcast %15 : vector<1x1x128xf32> to vector<16x8x128xf32>
    %17 = arith.mulf %14, %16 : vector<16x8x128xf32>
    %cst_10 = arith.constant dense<0.000000e+00> : vector<16x8xf32>
    %18 = vector.multi_reduction <add>, %17, %cst_10 [2] : vector<16x8x128xf32> to vector<16x8xf32>
    %cst_11 = arith.constant dense<0xFF800000> : vector<16xf32>
    %19 = vector.multi_reduction <maximumf>, %18, %cst_11 [1] : vector<16x8xf32> to vector<16xf32>
    %20 = vector.shape_cast %19 : vector<16xf32> to vector<16x1xf32>
    %21 = vector.broadcast %20 : vector<16x1xf32> to vector<16x8xf32>
    %22 = arith.subf %18, %21 : vector<16x8xf32>
    %23 = math.exp %22 : vector<16x8xf32>
    %cst_12 = arith.constant dense<0.000000e+00> : vector<16xf32>
    %24 = vector.multi_reduction <add>, %23, %cst_12 [1] : vector<16x8xf32> to vector<16xf32>
    %25 = vector.shape_cast %24 : vector<16xf32> to vector<16x1xf32>
    %26 = tpu.reciprocal %25 {approx = true} : vector<16x1xf32> -> vector<16x1xf32>
    %27 = vector.broadcast %26 : vector<16x1xf32> to vector<16x8xf32>
    %28 = arith.mulf %23, %27 : vector<16x8xf32>
    %29 = vector.shape_cast %28 : vector<16x8xf32> to vector<16x8x1xf32>
    %30 = vector.broadcast %29 : vector<16x8x1xf32> to vector<16x8x128xf32>
    %31 = arith.mulf %30, %6 : vector<16x8x128xf32>
    %cst_13 = arith.constant dense<0.000000e+00> : vector<16x128xf32>
    %32 = vector.multi_reduction <add>, %31, %cst_13 [1] : vector<16x8x128xf32> to vector<16x128xf32>
    %c0_14 = arith.constant 0 : index
    %c0_15 = arith.constant 0 : index
    %33 = vector.load %arg5[%c0_14, %c0_15] : memref<16x128xf32, #tpu.memory_space<vmem>>, vector<16x128xf32>
    tpu.vector_store %arg5[%c0_14, %c0_15], %32 {strides = array<i32>} : memref<16x128xf32, #tpu.memory_space<vmem>>, vector<16x128xf32>,
    return
  }
  func.func @transform_0(%arg0: i32) -> (i32, i32) {
    %c0_i32 = arith.constant 0 : i32
    %c0_i32_0 = arith.constant 0 : i32
    return %arg0, %c0_i32 : i32, i32
  }
  func.func @transform_1(%arg0: i32) -> (i32, i32, i32) {
    %c0_i32 = arith.constant 0 : i32
    %c0_i32_0 = arith.constant 0 : i32
    %c0_i32_1 = arith.constant 0 : i32
    return %arg0, %c0_i32, %c0_i32_0 : i32, i32, i32
  }
  func.func @transform_2(%arg0: i32) -> (i32, i32) {
    %c0_i32 = arith.constant 0 : i32
    %c0_i32_0 = arith.constant 0 : i32
    %c0_i32_1 = arith.constant 0 : i32
    return %c0_i32, %c0_i32_0 : i32, i32
  }
  func.func @transform_3(%arg0: i32) -> (i32, i32) {
    %c0_i32 = arith.constant 0 : i32
    %c0_i32_0 = arith.constant 0 : i32
    %c0_i32_1 = arith.constant 0 : i32
    return %c0_i32, %c0_i32_0 : i32, i32
  }
  func.func @transform_4(%arg0: i32) -> (i32, i32) {
    %c0_i32 = arith.constant 0 : i32
    %c0_i32_0 = arith.constant 0 : i32
    return %arg0, %c0_i32 : i32, i32
  }
}

</mosaic_0001>

<llo_original>
// kernel: tpu_custom_call.1
$region0: #{tpu_custom_call.1}
  #allocation0 [shape = 'u32[]', space=smem, size = 0x4, offset = 0x4, fixed_abs, tag = 'smem constant byte address 0x4 - core index']
  #allocation1 [shape = 'u32[144,128]{1,0:T(1,128)}', space=vmem, size = 0x12000, scoped, tag = 'internal scratch']
  %s0 = inlined_call_operand.hbm [shape: f32[16,128], index: 0, kind: input, shape index: {}]
  %s1 = inlined_call_operand.hbm [shape: f32[16,8,128], index: 1, kind: input, shape index: {}]
  %s2 = inlined_call_operand.hbm [shape: f32[128,128], index: 2, kind: input, shape index: {}]
  %s3 = inlined_call_operand.vmem [shape: f32[1,128], index: 3, kind: input, shape index: {}]
  %s4 = inlined_call_operand.hbm [shape: f32[16,128], index: 4, kind: output, shape index: {}]
  %s5 = sld [smem:[#allocation0]]
  $region38: #{tpu_custom_call.1} parent=0
    _
  %s7 = ssub.s32 1, %s5
  %s8 = scalar_select 0, %s7, %s5
  $region1: #{tpu_custom_call.1} parent=0
    #allocation2 [shape = 'u8[8192]{0}', space=vmem, size = 0x2000, scoped, tag = 'input window, operand 0, single buffered']
    #allocation3 [shape = 's32[1]{0}', space=sflag, size = 0x4, scoped, tag = 'scoped memory for tpu_custom_call.1']
    #allocation4 [shape = 's32[1]{0}', space=sflag, size = 0x4, scoped, tag = 'scoped memory for tpu_custom_call.1']
    #allocation5 [shape = 'u8[65536]{0}', space=vmem, size = 0x10000, scoped, tag = 'input window, operand 1, single buffered']
    #allocation6 [shape = 's32[1]{0}', space=sflag, size = 0x4, scoped, tag = 'scoped memory for tpu_custom_call.1']
    #allocation7 [shape = 'u8[65536]{0}', space=vmem, size = 0x10000, scoped, tag = 'input window, operand 2, single buffered']
    #allocation8 [shape = 'u8[8192]{0}', space=vmem, size = 0x2000, scoped, tag = 'output window, operand 0, single buffered']
    %9 = vsyncpa [#allocation3], 0
    %10 = vsyncpa [#allocation6], 0
    %11 = vsyncpa [#allocation4], 0
    // Predicated region
    $region2: #{tpu_custom_call.1} parent=1 // pred_check
      _
    $region3: #{tpu_custom_call.1} parent=1 // pred_check_branch
      %13 = sbr.rel (0) target = $region5
    $region4: #{tpu_custom_call.1} parent=1 // pred_region
      %s15 = ssub.s32 256, 256
      %16 = vsyncadd [#allocation3], %s15
      %s17 = sshll.u32 [#allocation2], 4
      %s18 = int_to_ptr.vmem [resolvable:$true] %s17
      %23 = dma.hbm_to_vmem [thread:$0]  %s0, 256, %s18, [#allocation3], 128, 128, 8
    $region5: #{tpu_custom_call.1} parent=1 // pred_fallthru
      _
    // Predicated region
    $region6: #{tpu_custom_call.1} parent=1 // pred_check
      _
    $region7: #{tpu_custom_call.1} parent=1 // pred_check_branch
      %25 = sbr.rel (0) target = $region9
    $region8: #{tpu_custom_call.1} parent=1 // pred_region
      %s27 = ssub.s32 2048, 2048
      %28 = vsyncadd [#allocation6], %s27
      %s29 = sshll.u32 [#allocation5], 4
      %s30 = int_to_ptr.vmem [resolvable:$true] %s29
      %35 = dma.hbm_to_vmem [thread:$0]  %s1, 2048, %s30, [#allocation6], 128, 128, 8
    $region9: #{tpu_custom_call.1} parent=1 // pred_fallthru
      _
    // Predicated region
    $region10: #{tpu_custom_call.1} parent=1 // pred_check
      _
    $region11: #{tpu_custom_call.1} parent=1 // pred_check_branch
      %37 = sbr.rel (0) target = $region13
    $region12: #{tpu_custom_call.1} parent=1 // pred_region
      %s39 = ssub.s32 2048, 2048
      %40 = vsyncadd [#allocation6], %s39
      %s41 = sshll.u32 [#allocation7], 4
      %s42 = int_to_ptr.vmem [resolvable:$true] %s41
      %47 = dma.hbm_to_vmem [thread:$0]  %s2, 2048, %s42, [#allocation6], 128, 128, 8
    $region13: #{tpu_custom_call.1} parent=1 // pred_fallthru
      _
    // Predicated region
    $region14: #{tpu_custom_call.1} parent=1 // pred_check
      _
    $region15: #{tpu_custom_call.1} parent=1 // pred_check_branch
      %49 = sbr.rel (0) target = $region17
    $region16: #{tpu_custom_call.1} parent=1 // pred_region
      _
    $region17: #{tpu_custom_call.1} parent=1 // pred_fallthru
      _
    // Predicated region
    $region18: #{tpu_custom_call.1} parent=1 // pred_check
      _
    $region19: #{tpu_custom_call.1} parent=1 // pred_check_branch
      %51 = sbr.rel (0) target = $region21
    $region20: #{tpu_custom_call.1} parent=1 // pred_region
      %52 = dma.done [#allocation3], 256
    $region21: #{tpu_custom_call.1} parent=1 // pred_fallthru
      _
    // Predicated region
    $region22: #{tpu_custom_call.1} parent=1 // pred_check
      _
    $region23: #{tpu_custom_call.1} parent=1 // pred_check_branch
      %54 = sbr.rel (0) target = $region25
    $region24: #{tpu_custom_call.1} parent=1 // pred_region
      %55 = dma.done [#allocation6], 2048
    $region25: #{tpu_custom_call.1} parent=1 // pred_fallthru
      _
    // Predicated region
    $region26: #{tpu_custom_call.1} parent=1 // pred_check
      _
    $region27: #{tpu_custom_call.1} parent=1 // pred_check_branch
      %57 = sbr.rel (0) target = $region29
    $region28: #{tpu_custom_call.1} parent=1 // pred_region
      %58 = dma.done [#allocation6], 2048
    $region29: #{tpu_custom_call.1} parent=1 // pred_fallthru
      _
    %v59 = vld [vmem:[#allocation2] sm:$0xff]
    %v60 = vld [vmem:[#allocation2 + $0x8] sm:$0xff]
    %v61 = vld [vmem:[#allocation5] sm:$0xff]
    %v62 = vld [vmem:[#allocation5 + $0x8] sm:$0xff]
    %v63 = vld [vmem:[#allocation5 + $0x10] sm:$0xff]
    %v64 = vld [vmem:[#allocation5 + $0x18] sm:$0xff]
    %v65 = vld [vmem:[#allocation5 + $0x20] sm:$0xff]
    %v66 = vld [vmem:[#allocation5 + $0x28] sm:$0xff]
    %v67 = vld [vmem:[#allocation5 + $0x30] sm:$0xff]
    %v68 = vld [vmem:[#allocation5 + $0x38] sm:$0xff]
    %v69 = vld [vmem:[#allocation5 + $0x40] sm:$0xff]
    %v70 = vld [vmem:[#allocation5 + $0x48] sm:$0xff]
    %v71 = vld [vmem:[#allocation5 + $0x50] sm:$0xff]
    %v72 = vld [vmem:[#allocation5 + $0x58] sm:$0xff]
    %v73 = vld [vmem:[#allocation5 + $0x60] sm:$0xff]
    %v74 = vld [vmem:[#allocation5 + $0x68] sm:$0xff]
    %v75 = vld [vmem:[#allocation5 + $0x70] sm:$0xff]
    %v76 = vld [vmem:[#allocation5 + $0x78] sm:$0xff]
    %v77 = vld [vmem:[#allocation7] sm:$0xff]
    %v78 = vld [vmem:[#allocation7 + $0x8] sm:$0xff]
    %v79 = vld [vmem:[#allocation7 + $0x10] sm:$0xff]
    %v80 = vld [vmem:[#allocation7 + $0x18] sm:$0xff]
    %v81 = vld [vmem:[#allocation7 + $0x20] sm:$0xff]
    %v82 = vld [vmem:[#allocation7 + $0x28] sm:$0xff]
    %v83 = vld [vmem:[#allocation7 + $0x30] sm:$0xff]
    %v84 = vld [vmem:[#allocation7 + $0x38] sm:$0xff]
    %v85 = vld [vmem:[#allocation7 + $0x40] sm:$0xff]
    %v86 = vld [vmem:[#allocation7 + $0x48] sm:$0xff]
    %v87 = vld [vmem:[#allocation7 + $0x50] sm:$0xff]
    %v88 = vld [vmem:[#allocation7 + $0x58] sm:$0xff]
    %v89 = vld [vmem:[#allocation7 + $0x60] sm:$0xff]
    %v90 = vld [vmem:[#allocation7 + $0x68] sm:$0xff]
    %v91 = vld [vmem:[#allocation7 + $0x70] sm:$0xff]
    %v92 = vld [vmem:[#allocation7 + $0x78] sm:$0xff]
    %v93 = vld [vmem:[%s3] sm:$0x1]
    %94 = vmatprep.subr.mxu0 0.0
    %95 = vmatpush1.msra.mxu0 %v77
    %96 = vmatprep.subr.mxu0 0.0
    %97 = vmatpush1.msra.mxu0 %v78
    %98 = vmatprep.subr.mxu0 0.0
    %99 = vmatpush1.msra.mxu0 %v79
    %100 = vmatprep.subr.mxu0 0.0
    %101 = vmatpush1.msra.mxu0 %v80
    %102 = vmatprep.subr.mxu0 0.0
    %103 = vmatpush1.msra.mxu0 %v81
    %104 = vmatprep.subr.mxu0 0.0
    %105 = vmatpush1.msra.mxu0 %v82
    %106 = vmatprep.subr.mxu0 0.0
    %107 = vmatpush1.msra.mxu0 %v83
    %108 = vmatprep.subr.mxu0 0.0
    %109 = vmatpush1.msra.mxu0 %v84
    %110 = vmatprep.subr.mxu0 0.0
    %111 = vmatpush1.msra.mxu0 %v85
    %112 = vmatprep.subr.mxu0 0.0
    %113 = vmatpush1.msra.mxu0 %v86
    %114 = vmatprep.subr.mxu0 0.0
    %115 = vmatpush1.msra.mxu0 %v87
    %116 = vmatprep.subr.mxu0 0.0
    %117 = vmatpush1.msra.mxu0 %v88
    %118 = vmatprep.subr.mxu0 0.0
    %119 = vmatpush1.msra.mxu0 %v89
    %120 = vmatprep.subr.mxu0 0.0
    %121 = vmatpush1.msra.mxu0 %v90
    %122 = vmatprep.subr.mxu0 0.0
    %123 = vmatpush1.msra.mxu0 %v91
    %124 = vmatprep.subr.mxu0 0.0
    %125 = vmatpush1.msra.mxu0 %v92
    %126 = vmatprep.subr.mxu0 0.0
    %127 = vmatpush1.msra.mxu0 0.0
    %128 = vmatprep.subr.mxu0 0.0
    %129 = vmatpush1.msra.mxu0 0.0
    %130 = vmatprep.subr.mxu0 0.0
    %131 = vmatpush1.msra.mxu0 0.0
    %132 = vmatprep.subr.mxu0 0.0
    %133 = vmatpush1.msra.mxu0 0.0
    %134 = vmatprep.subr.mxu0 0.0
    %135 = vmatpush1.msra.mxu0 0.0
    %136 = vmatprep.subr.mxu0 0.0
    %137 = vmatpush1.msra.mxu0 0.0
    %138 = vmatprep.subr.mxu0 0.0
    %139 = vmatpush1.msra.mxu0 0.0
    %140 = vmatprep.subr.mxu0 0.0
    %141 = vmatpush1.msra.mxu0 0.0
    %142 = vmatprep.subr.mxu0 0.0
    %143 = vmatpush1.msra.mxu0 0.0
    %144 = vmatprep.subr.mxu0 0.0
    %145 = vmatpush1.msra.mxu0 0.0
    %146 = vmatprep.subr.mxu0 0.0
    %147 = vmatpush1.msra.mxu0 0.0
    %148 = vmatprep.subr.mxu0 0.0
    %149 = vmatpush1.msra.mxu0 0.0
    %150 = vmatprep.subr.mxu0 0.0
    %151 = vmatpush1.msra.mxu0 0.0
    %152 = vmatprep.subr.mxu0 0.0
    %153 = vmatpush1.msra.mxu0 0.0
    %154 = vmatprep.subr.mxu0 0.0
    %155 = vmatpush1.msra.mxu0 0.0
    %156 = vmatprep.subr.mxu0 0.0
    %157 = vmatpush1.msra.mxu0 0.0
    %158 = vmatprep.mubr.f32.mxu0 0.0
    %159 = vmatmul.mubr.f32.gmra.mrb[0].mxu0 %v61
    %v160 = vpop.f32.mrb[0].mxu0
    %v161 = vadd.f32 0.0, %v160
    %v162 = vpop.f32.mrb[0].mxu0
    %163 = vmatprep.mubr.f32.mxu0 0.0
    %164 = vmatmul.mubr.f32.gmra.mrb[0].mxu0 %v62
    %v165 = vpop.f32.mrb[0].mxu0
    %v166 = vadd.f32 0.0, %v165
    %v167 = vpop.f32.mrb[0].mxu0
    %168 = vmatprep.mubr.f32.mxu0 0.0
    %169 = vmatmul.mubr.f32.gmra.mrb[0].mxu0 %v63
    %v170 = vpop.f32.mrb[0].mxu0
    %v171 = vadd.f32 0.0, %v170
    %v172 = vpop.f32.mrb[0].mxu0
    %173 = vmatprep.mubr.f32.mxu0 0.0
    %174 = vmatmul.mubr.f32.gmra.mrb[0].mxu0 %v64
    %v175 = vpop.f32.mrb[0].mxu0
    %v176 = vadd.f32 0.0, %v175
    %v177 = vpop.f32.mrb[0].mxu0
    %178 = vmatprep.mubr.f32.mxu0 0.0
    %179 = vmatmul.mubr.f32.gmra.mrb[0].mxu0 %v65
    %v180 = vpop.f32.mrb[0].mxu0
    %v181 = vadd.f32 0.0, %v180
    %v182 = vpop.f32.mrb[0].mxu0
    %183 = vmatprep.mubr.f32.mxu0 0.0
    %184 = vmatmul.mubr.f32.gmra.mrb[0].mxu0 %v66
    %v185 = vpop.f32.mrb[0].mxu0
    %v186 = vadd.f32 0.0, %v185
    %v187 = vpop.f32.mrb[0].mxu0
    %188 = vmatprep.mubr.f32.mxu0 0.0
    %189 = vmatmul.mubr.f32.gmra.mrb[0].mxu0 %v67
    %v190 = vpop.f32.mrb[0].mxu0
    %v191 = vadd.f32 0.0, %v190
    %v192 = vpop.f32.mrb[0].mxu0
    %193 = vmatprep.mubr.f32.mxu0 0.0
    %194 = vmatmul.mubr.f32.gmra.mrb[0].mxu0 %v68
    %v195 = vpop.f32.mrb[0].mxu0
    %v196 = vadd.f32 0.0, %v195
    %v197 = vpop.f32.mrb[0].mxu0
    %198 = vmatprep.mubr.f32.mxu0 0.0
    %199 = vmatmul.mubr.f32.gmra.mrb[0].mxu0 %v69
    %v200 = vpop.f32.mrb[0].mxu0
    %v201 = vadd.f32 0.0, %v200
    %v202 = vpop.f32.mrb[0].mxu0
    %203 = vmatprep.mubr.f32.mxu0 0.0
    %204 = vmatmul.mubr.f32.gmra.mrb[0].mxu0 %v70
    %v205 = vpop.f32.mrb[0].mxu0
    %v206 = vadd.f32 0.0, %v205
    %v207 = vpop.f32.mrb[0].mxu0
    %208 = vmatprep.mubr.f32.mxu0 0.0
    %209 = vmatmul.mubr.f32.gmra.mrb[0].mxu0 %v71
    %v210 = vpop.f32.mrb[0].mxu0
    %v211 = vadd.f32 0.0, %v210
    %v212 = vpop.f32.mrb[0].mxu0
    %213 = vmatprep.mubr.f32.mxu0 0.0
    %214 = vmatmul.mubr.f32.gmra.mrb[0].mxu0 %v72
    %v215 = vpop.f32.mrb[0].mxu0
    %v216 = vadd.f32 0.0, %v215
    %v217 = vpop.f32.mrb[0].mxu0
    %218 = vmatprep.mubr.f32.mxu0 0.0
    %219 = vmatmul.mubr.f32.gmra.mrb[0].mxu0 %v73
    %v220 = vpop.f32.mrb[0].mxu0
    %v221 = vadd.f32 0.0, %v220
    %v222 = vpop.f32.mrb[0].mxu0
    %223 = vmatprep.mubr.f32.mxu0 0.0
    %224 = vmatmul.mubr.f32.gmra.mrb[0].mxu0 %v74
    %v225 = vpop.f32.mrb[0].mxu0
    %v226 = vadd.f32 0.0, %v225
    %v227 = vpop.f32.mrb[0].mxu0
    %228 = vmatprep.mubr.f32.mxu0 0.0
    %229 = vmatmul.mubr.f32.gmra.mrb[0].mxu0 %v75
    %v230 = vpop.f32.mrb[0].mxu0
    %v231 = vadd.f32 0.0, %v230
    %v232 = vpop.f32.mrb[0].mxu0
    %233 = vmatprep.mubr.f32.mxu0 0.0
    %234 = vmatmul.mubr.f32.gmra.mrb[0].mxu0 %v76
    %v235 = vpop.f32.mrb[0].mxu0
    %v236 = vadd.f32 0.0, %v235
    %v237 = vpop.f32.mrb[0].mxu0
    %238 = vdwg.mxu0
    %v241 = vcombine.high %v59, %v59
    %v243 = vunpack.c.l.s4 1966171168
    %v244 = vunpack.c.0.s8 %v243
    %v245 = vlaneseq
    %v246 = vshrl.u32 %v245, 7
    %v247 = vsub.s32 %v244, %v246
    %v248 = vrot.slane %v59, %v247
    %v250 = vunpack.c.l.s4 1966171168
    %v251 = vunpack.c.0.s8 %v250
    %v252 = vlaneseq
    %v253 = vshrl.u32 %v252, 7
    %v254 = vsub.s32 %v251, %v253
    %v255 = vrot.slane %v241, %v254
    %v256 = vcombine.high %v248, %v248
    %v257 = vcombine.high %v255, %v255
    %v259 = vunpack.c.l.s4 1966171168
    %v260 = vunpack.c.0.s8 %v259
    %v261 = vlaneseq
    %v262 = vshrl.u32 %v261, 7
    %v263 = vsub.s32 %v260, %v262
    %v264 = vrot.slane %v248, %v263
    %v266 = vunpack.c.l.s4 1966171168
    %v267 = vunpack.c.0.s8 %v266
    %v268 = vlaneseq
    %v269 = vshrl.u32 %v268, 7
    %v270 = vsub.s32 %v267, %v269
    %v271 = vrot.slane %v255, %v270
    %v273 = vunpack.c.l.s4 1966171168
    %v274 = vunpack.c.0.s8 %v273
    %v275 = vlaneseq
    %v276 = vshrl.u32 %v275, 7
    %v277 = vsub.s32 %v274, %v276
    %v278 = vrot.slane %v256, %v277
    %v280 = vunpack.c.l.s4 1966171168
    %v281 = vunpack.c.0.s8 %v280
    %v282 = vlaneseq
    %v283 = vshrl.u32 %v282, 7
    %v284 = vsub.s32 %v281, %v283
    %v285 = vrot.slane %v257, %v284
    %v286 = vcombine.high %v264, %v264
    %v287 = vcombine.high %v271, %v271
    %v288 = vcombine.high %v278, %v278
    %v289 = vcombine.high %v285, %v285
    %v290 = vcombine.high %v60, %v60
    %v292 = vunpack.c.l.s4 1966171168
    %v293 = vunpack.c.0.s8 %v292
    %v294 = vlaneseq
    %v295 = vshrl.u32 %v294, 7
    %v296 = vsub.s32 %v293, %v295
    %v297 = vrot.slane %v60, %v296
    %v299 = vunpack.c.l.s4 1966171168
    %v300 = vunpack.c.0.s8 %v299
    %v301 = vlaneseq
    %v302 = vshrl.u32 %v301, 7
    %v303 = vsub.s32 %v300, %v302
    %v304 = vrot.slane %v290, %v303
    %v305 = vcombine.high %v297, %v297
    %v306 = vcombine.high %v304, %v304
    %v308 = vunpack.c.l.s4 1966171168
    %v309 = vunpack.c.0.s8 %v308
    %v310 = vlaneseq
    %v311 = vshrl.u32 %v310, 7
    %v312 = vsub.s32 %v309, %v311
    %v313 = vrot.slane %v297, %v312
    %v315 = vunpack.c.l.s4 1966171168
    %v316 = vunpack.c.0.s8 %v315
    %v317 = vlaneseq
    %v318 = vshrl.u32 %v317, 7
    %v319 = vsub.s32 %v316, %v318
    %v320 = vrot.slane %v304, %v319
    %v322 = vunpack.c.l.s4 1966171168
    %v323 = vunpack.c.0.s8 %v322
    %v324 = vlaneseq
    %v325 = vshrl.u32 %v324, 7
    %v326 = vsub.s32 %v323, %v325
    %v327 = vrot.slane %v305, %v326
    %v329 = vunpack.c.l.s4 1966171168
    %v330 = vunpack.c.0.s8 %v329
    %v331 = vlaneseq
    %v332 = vshrl.u32 %v331, 7
    %v333 = vsub.s32 %v330, %v332
    %v334 = vrot.slane %v306, %v333
    %v335 = vcombine.high %v313, %v313
    %v336 = vcombine.high %v320, %v320
    %v337 = vcombine.high %v327, %v327
    %v338 = vcombine.high %v334, %v334
    %v339 = vlaneseq
    %v340 = vshrl.u32 %v339, 7
    %v341 = vsub.s32 0, %v340
    %v342 = vrot.slane %v264, %v341
    %v343 = vlaneseq
    %v344 = vshrl.u32 %v343, 7
    %v345 = vsub.s32 0, %v344
    %v346 = vrot.slane %v278, %v345
    %v347 = vlaneseq
    %v348 = vshrl.u32 %v347, 7
    %v349 = vsub.s32 0, %v348
    %v350 = vrot.slane %v286, %v349
    %v351 = vlaneseq
    %v352 = vshrl.u32 %v351, 7
    %v353 = vsub.s32 0, %v352
    %v354 = vrot.slane %v288, %v353
    %v355 = vlaneseq
    %v356 = vshrl.u32 %v355, 7
    %v357 = vsub.s32 0, %v356
    %v358 = vrot.slane %v271, %v357
    %v359 = vlaneseq
    %v360 = vshrl.u32 %v359, 7
    %v361 = vsub.s32 0, %v360
    %v362 = vrot.slane %v285, %v361
    %v363 = vlaneseq
    %v364 = vshrl.u32 %v363, 7
    %v365 = vsub.s32 0, %v364
    %v366 = vrot.slane %v287, %v365
    %v367 = vlaneseq
    %v368 = vshrl.u32 %v367, 7
    %v369 = vsub.s32 0, %v368
    %v370 = vrot.slane %v289, %v369
    %v371 = vlaneseq
    %v372 = vshrl.u32 %v371, 7
    %v373 = vsub.s32 0, %v372
    %v374 = vrot.slane %v313, %v373
    %v375 = vlaneseq
    %v376 = vshrl.u32 %v375, 7
    %v377 = vsub.s32 0, %v376
    %v378 = vrot.slane %v327, %v377
    %v379 = vlaneseq
    %v380 = vshrl.u32 %v379, 7
    %v381 = vsub.s32 0, %v380
    %v382 = vrot.slane %v335, %v381
    %v383 = vlaneseq
    %v384 = vshrl.u32 %v383, 7
    %v385 = vsub.s32 0, %v384
    %v386 = vrot.slane %v337, %v385
    %v387 = vlaneseq
    %v388 = vshrl.u32 %v387, 7
    %v389 = vsub.s32 0, %v388
    %v390 = vrot.slane %v320, %v389
    %v391 = vlaneseq
    %v392 = vshrl.u32 %v391, 7
    %v393 = vsub.s32 0, %v392
    %v394 = vrot.slane %v334, %v393
    %v395 = vlaneseq
    %v396 = vshrl.u32 %v395, 7
    %v397 = vsub.s32 0, %v396
    %v398 = vrot.slane %v336, %v397
    %v399 = vlaneseq
    %v400 = vshrl.u32 %v399, 7
    %v401 = vsub.s32 0, %v400
    %v402 = vrot.slane %v338, %v401
    %v419 = vmul.f32 %v342, %v161
    %v420 = vmul.f32 %v346, %v166
    %v421 = vmul.f32 %v350, %v171
    %v422 = vmul.f32 %v354, %v176
    %v423 = vmul.f32 %v358, %v181
    %v424 = vmul.f32 %v362, %v186
    %v425 = vmul.f32 %v366, %v191
    %v426 = vmul.f32 %v370, %v196
    %v427 = vmul.f32 %v374, %v201
    %v428 = vmul.f32 %v378, %v206
    %v429 = vmul.f32 %v382, %v211
    %v430 = vmul.f32 %v386, %v216
    %v431 = vmul.f32 %v390, %v221
    %v432 = vmul.f32 %v394, %v226
    %v433 = vmul.f32 %v398, %v231
    %v434 = vmul.f32 %v402, %v236
    %vm435 = vcmp.gt.f32.partialorder %v419, 0.0
    %vm436 = vcmp.gt.f32.partialorder %v420, 0.0
    %vm437 = vcmp.gt.f32.partialorder %v421, 0.0
    %vm438 = vcmp.gt.f32.partialorder %v422, 0.0
    %vm439 = vcmp.gt.f32.partialorder %v423, 0.0
    %vm440 = vcmp.gt.f32.partialorder %v424, 0.0
    %vm441 = vcmp.gt.f32.partialorder %v425, 0.0
    %vm442 = vcmp.gt.f32.partialorder %v426, 0.0
    %vm443 = vcmp.gt.f32.partialorder %v427, 0.0
    %vm444 = vcmp.gt.f32.partialorder %v428, 0.0
    %vm445 = vcmp.gt.f32.partialorder %v429, 0.0
    %vm446 = vcmp.gt.f32.partialorder %v430, 0.0
    %vm447 = vcmp.gt.f32.partialorder %v431, 0.0
    %vm448 = vcmp.gt.f32.partialorder %v432, 0.0
    %vm449 = vcmp.gt.f32.partialorder %v433, 0.0
    %vm450 = vcmp.gt.f32.partialorder %v434, 0.0
    %v451 = vmul.f32 %v419, 0.2
    %v452 = vmul.f32 %v420, 0.2
    %v453 = vmul.f32 %v421, 0.2
    %v454 = vmul.f32 %v422, 0.2
    %v455 = vmul.f32 %v423, 0.2
    %v456 = vmul.f32 %v424, 0.2
    %v457 = vmul.f32 %v425, 0.2
    %v458 = vmul.f32 %v426, 0.2
    %v459 = vmul.f32 %v427, 0.2
    %v460 = vmul.f32 %v428, 0.2
    %v461 = vmul.f32 %v429, 0.2
    %v462 = vmul.f32 %v430, 0.2
    %v463 = vmul.f32 %v431, 0.2
    %v464 = vmul.f32 %v432, 0.2
    %v465 = vmul.f32 %v433, 0.2
    %v466 = vmul.f32 %v434, 0.2
    %v467 = vsel %vm435, %v419, %v451
    %v468 = vsel %vm436, %v420, %v452
    %v469 = vsel %vm437, %v421, %v453
    %v470 = vsel %vm438, %v422, %v454
    %v471 = vsel %vm439, %v423, %v455
    %v472 = vsel %vm440, %v424, %v456
    %v473 = vsel %vm441, %v425, %v457
    %v474 = vsel %vm442, %v426, %v458
    %v475 = vsel %vm443, %v427, %v459
    %v476 = vsel %vm444, %v428, %v460
    %v477 = vsel %vm445, %v429, %v461
    %v478 = vsel %vm446, %v430, %v462
    %v479 = vsel %vm447, %v431, %v463
    %v480 = vsel %vm448, %v432, %v464
    %v481 = vsel %vm449, %v433, %v465
    %v482 = vsel %vm450, %v434, %v466
    %v484 = vlaneseq
    %v485 = vshrl.u32 %v484, 7
    %v486 = vsub.s32 0, %v485
    %v487 = vrot.slane %v93, %v486
    %v489 = vmul.f32 %v467, %v487
    %v490 = vmul.f32 %v468, %v487
    %v491 = vmul.f32 %v469, %v487
    %v492 = vmul.f32 %v470, %v487
    %v493 = vmul.f32 %v471, %v487
    %v494 = vmul.f32 %v472, %v487
    %v495 = vmul.f32 %v473, %v487
    %v496 = vmul.f32 %v474, %v487
    %v497 = vmul.f32 %v475, %v487
    %v498 = vmul.f32 %v476, %v487
    %v499 = vmul.f32 %v477, %v487
    %v500 = vmul.f32 %v478, %v487
    %v501 = vmul.f32 %v479, %v487
    %v502 = vmul.f32 %v480, %v487
    %v503 = vmul.f32 %v481, %v487
    %v504 = vmul.f32 %v482, %v487
    %505 = vadd.xlane.f32.xlu0 %v489
    %v506 = vpop.xlane.xlu0 %505
    %507 = vadd.xlane.f32.xlu0 %v490
    %v508 = vpop.xlane.xlu0 %507
    %509 = vadd.xlane.f32.xlu0 %v491
    %v510 = vpop.xlane.xlu0 %509
    %511 = vadd.xlane.f32.xlu0 %v492
    %v512 = vpop.xlane.xlu0 %511
    %513 = vadd.xlane.f32.xlu0 %v493
    %v514 = vpop.xlane.xlu0 %513
    %515 = vadd.xlane.f32.xlu0 %v494
    %v516 = vpop.xlane.xlu0 %515
    %517 = vadd.xlane.f32.xlu0 %v495
    %v518 = vpop.xlane.xlu0 %517
    %519 = vadd.xlane.f32.xlu0 %v496
    %v520 = vpop.xlane.xlu0 %519
    %521 = vadd.xlane.f32.xlu0 %v497
    %v522 = vpop.xlane.xlu0 %521
    %523 = vadd.xlane.f32.xlu0 %v498
    %v524 = vpop.xlane.xlu0 %523
    %525 = vadd.xlane.f32.xlu0 %v499
    %v526 = vpop.xlane.xlu0 %525
    %527 = vadd.xlane.f32.xlu0 %v500
    %v528 = vpop.xlane.xlu0 %527
    %529 = vadd.xlane.f32.xlu0 %v501
    %v530 = vpop.xlane.xlu0 %529
    %531 = vadd.xlane.f32.xlu0 %v502
    %v532 = vpop.xlane.xlu0 %531
    %533 = vadd.xlane.f32.xlu0 %v503
    %v534 = vpop.xlane.xlu0 %533
    %535 = vadd.xlane.f32.xlu0 %v504
    %v536 = vpop.xlane.xlu0 %535
    %v553 = vlaneseq
    %v554 = vand.u32 %v553, 127
    %v555 = vlaneseq
    %v556 = vshrl.u32 %v555, 7
    %v557 = vsub.s32 %v554, %v556
    %v558 = vrot.slane %v506, %v557
    %v559 = vlaneseq
    %v560 = vshrl.u32 %v559, 7
    %v561 = vsub.s32 %v554, %v560
    %v562 = vrot.slane %v508, %v561
    %v563 = vlaneseq
    %v564 = vshrl.u32 %v563, 7
    %v565 = vsub.s32 %v554, %v564
    %v566 = vrot.slane %v510, %v565
    %v567 = vlaneseq
    %v568 = vshrl.u32 %v567, 7
    %v569 = vsub.s32 %v554, %v568
    %v570 = vrot.slane %v512, %v569
    %v571 = vlaneseq
    %v572 = vshrl.u32 %v571, 7
    %v573 = vsub.s32 %v554, %v572
    %v574 = vrot.slane %v514, %v573
    %v575 = vlaneseq
    %v576 = vshrl.u32 %v575, 7
    %v577 = vsub.s32 %v554, %v576
    %v578 = vrot.slane %v516, %v577
    %v579 = vlaneseq
    %v580 = vshrl.u32 %v579, 7
    %v581 = vsub.s32 %v554, %v580
    %v582 = vrot.slane %v518, %v581
    %v583 = vlaneseq
    %v584 = vshrl.u32 %v583, 7
    %v585 = vsub.s32 %v554, %v584
    %v586 = vrot.slane %v520, %v585
    %v587 = vlaneseq
    %v588 = vshrl.u32 %v587, 7
    %v589 = vsub.s32 %v554, %v588
    %v590 = vrot.slane %v522, %v589
    %v591 = vlaneseq
    %v592 = vshrl.u32 %v591, 7
    %v593 = vsub.s32 %v554, %v592
    %v594 = vrot.slane %v524, %v593
    %v595 = vlaneseq
    %v596 = vshrl.u32 %v595, 7
    %v597 = vsub.s32 %v554, %v596
    %v598 = vrot.slane %v526, %v597
    %v599 = vlaneseq
    %v600 = vshrl.u32 %v599, 7
    %v601 = vsub.s32 %v554, %v600
    %v602 = vrot.slane %v528, %v601
    %v603 = vlaneseq
    %v604 = vshrl.u32 %v603, 7
    %v605 = vsub.s32 %v554, %v604
    %v606 = vrot.slane %v530, %v605
    %v607 = vlaneseq
    %v608 = vshrl.u32 %v607, 7
    %v609 = vsub.s32 %v554, %v608
    %v610 = vrot.slane %v532, %v609
    %v611 = vlaneseq
    %v612 = vshrl.u32 %v611, 7
    %v613 = vsub.s32 %v554, %v612
    %v614 = vrot.slane %v534, %v613
    %v615 = vlaneseq
    %v616 = vshrl.u32 %v615, 7
    %v617 = vsub.s32 %v554, %v616
    %v618 = vrot.slane %v536, %v617
    %vm619 = vcmask 1041409
    %v620 = vsel %vm619, %v562, %v558
    %vm621 = vcmask 1042434
    %v622 = vsel %vm621, %v566, %v620
    %vm623 = vcmask 1043459
    %v624 = vsel %vm623, %v570, %v622
    %vm625 = vcmask 1044484
    %v626 = vsel %vm625, %v574, %v624
    %vm627 = vcmask 1045509
    %v628 = vsel %vm627, %v578, %v626
    %vm629 = vcmask 1046534
    %v630 = vsel %vm629, %v582, %v628
    %vm631 = vcmask 1047559
    %v632 = vsel %vm631, %v586, %v630
    %v633 = vsel %vm619, %v594, %v590
    %v634 = vsel %vm621, %v598, %v633
    %v635 = vsel %vm623, %v602, %v634
    %v636 = vsel %vm625, %v606, %v635
    %v637 = vsel %vm627, %v610, %v636
    %v638 = vsel %vm629, %v614, %v637
    %v639 = vsel %vm631, %v618, %v638
    %vm642 = vcmask 64512
    %v643 = vsel %vm642, %v632, -inf
    %644 = vmax.xlane.f32.xlu0 %v643
    %v645 = vpop.xlane.xlu0 %644
    %v646 = vsel %vm642, %v639, -inf
    %647 = vmax.xlane.f32.xlu0 %v646
    %v648 = vpop.xlane.xlu0 %647
    %v651 = vlaneseq
    %v652 = vshrl.u32 %v651, 7
    %v653 = vsub.s32 0, %v652
    %v654 = vrot.slane %v645, %v653
    %v655 = vlaneseq
    %v656 = vshrl.u32 %v655, 7
    %v657 = vsub.s32 1, %v656
    %v658 = vrot.slane %v645, %v657
    %v659 = vlaneseq
    %v660 = vshrl.u32 %v659, 7
    %v661 = vsub.s32 2, %v660
    %v662 = vrot.slane %v645, %v661
    %v663 = vlaneseq
    %v664 = vshrl.u32 %v663, 7
    %v665 = vsub.s32 3, %v664
    %v666 = vrot.slane %v645, %v665
    %v667 = vlaneseq
    %v668 = vshrl.u32 %v667, 7
    %v669 = vsub.s32 4, %v668
    %v670 = vrot.slane %v645, %v669
    %v671 = vlaneseq
    %v672 = vshrl.u32 %v671, 7
    %v673 = vsub.s32 5, %v672
    %v674 = vrot.slane %v645, %v673
    %v675 = vlaneseq
    %v676 = vshrl.u32 %v675, 7
    %v677 = vsub.s32 6, %v676
    %v678 = vrot.slane %v645, %v677
    %v679 = vlaneseq
    %v680 = vshrl.u32 %v679, 7
    %v681 = vsub.s32 7, %v680
    %v682 = vrot.slane %v645, %v681
    %v683 = vlaneseq
    %v684 = vshrl.u32 %v683, 7
    %v685 = vsub.s32 0, %v684
    %v686 = vrot.slane %v648, %v685
    %v687 = vlaneseq
    %v688 = vshrl.u32 %v687, 7
    %v689 = vsub.s32 1, %v688
    %v690 = vrot.slane %v648, %v689
    %v691 = vlaneseq
    %v692 = vshrl.u32 %v691, 7
    %v693 = vsub.s32 2, %v692
    %v694 = vrot.slane %v648, %v693
    %v695 = vlaneseq
    %v696 = vshrl.u32 %v695, 7
    %v697 = vsub.s32 3, %v696
    %v698 = vrot.slane %v648, %v697
    %v699 = vlaneseq
    %v700 = vshrl.u32 %v699, 7
    %v701 = vsub.s32 4, %v700
    %v702 = vrot.slane %v648, %v701
    %v703 = vlaneseq
    %v704 = vshrl.u32 %v703, 7
    %v705 = vsub.s32 5, %v704
    %v706 = vrot.slane %v648, %v705
    %v707 = vlaneseq
    %v708 = vshrl.u32 %v707, 7
    %v709 = vsub.s32 6, %v708
    %v710 = vrot.slane %v648, %v709
    %v711 = vlaneseq
    %v712 = vshrl.u32 %v711, 7
    %v713 = vsub.s32 7, %v712
    %v714 = vrot.slane %v648, %v713
    %v731 = vsub.f32 %v506, %v654
    %v732 = vsub.f32 %v508, %v658
    %v733 = vsub.f32 %v510, %v662
    %v734 = vsub.f32 %v512, %v666
    %v735 = vsub.f32 %v514, %v670
    %v736 = vsub.f32 %v516, %v674
    %v737 = vsub.f32 %v518, %v678
    %v738 = vsub.f32 %v520, %v682
    %v739 = vsub.f32 %v522, %v686
    %v740 = vsub.f32 %v524, %v690
    %v741 = vsub.f32 %v526, %v694
    %v742 = vsub.f32 %v528, %v698
    %v743 = vsub.f32 %v530, %v702
    %v744 = vsub.f32 %v532, %v706
    %v745 = vsub.f32 %v534, %v710
    %v746 = vsub.f32 %v536, %v714
    %v747 = vmul.f32 %v731, 1.442695
    %v748 = vpow.pop %v747
    %v749 = vmul.f32 %v732, 1.442695
    %v750 = vpow.pop %v749
    %v751 = vmul.f32 %v733, 1.442695
    %v752 = vpow.pop %v751
    %v753 = vmul.f32 %v734, 1.442695
    %v754 = vpow.pop %v753
    %v755 = vmul.f32 %v735, 1.442695
    %v756 = vpow.pop %v755
    %v757 = vmul.f32 %v736, 1.442695
    %v758 = vpow.pop %v757
    %v759 = vmul.f32 %v737, 1.442695
    %v760 = vpow.pop %v759
    %v761 = vmul.f32 %v738, 1.442695
    %v762 = vpow.pop %v761
    %v763 = vmul.f32 %v739, 1.442695
    %v764 = vpow.pop %v763
    %v765 = vmul.f32 %v740, 1.442695
    %v766 = vpow.pop %v765
    %v767 = vmul.f32 %v741, 1.442695
    %v768 = vpow.pop %v767
    %v769 = vmul.f32 %v742, 1.442695
    %v770 = vpow.pop %v769
    %v771 = vmul.f32 %v743, 1.442695
    %v772 = vpow.pop %v771
    %v773 = vmul.f32 %v744, 1.442695
    %v774 = vpow.pop %v773
    %v775 = vmul.f32 %v745, 1.442695
    %v776 = vpow.pop %v775
    %v777 = vmul.f32 %v746, 1.442695
    %v778 = vpow.pop %v777
    %795 = vset.pattern.permute.xlu0 0
    %796 = vperm.xlu0 %795, %v748
    %v797 = vpop.permute.xlu0 %796
    %798 = vset.pattern.permute.xlu0 0
    %799 = vperm.xlu0 %798, %v750
    %v800 = vpop.permute.xlu0 %799
    %801 = vset.pattern.permute.xlu0 0
    %802 = vperm.xlu0 %801, %v752
    %v803 = vpop.permute.xlu0 %802
    %804 = vset.pattern.permute.xlu0 0
    %805 = vperm.xlu0 %804, %v754
    %v806 = vpop.permute.xlu0 %805
    %807 = vset.pattern.permute.xlu0 0
    %808 = vperm.xlu0 %807, %v756
    %v809 = vpop.permute.xlu0 %808
    %810 = vset.pattern.permute.xlu0 0
    %811 = vperm.xlu0 %810, %v758
    %v812 = vpop.permute.xlu0 %811
    %813 = vset.pattern.permute.xlu0 0
    %814 = vperm.xlu0 %813, %v760
    %v815 = vpop.permute.xlu0 %814
    %816 = vset.pattern.permute.xlu0 0
    %817 = vperm.xlu0 %816, %v762
    %v818 = vpop.permute.xlu0 %817
    %819 = vset.pattern.permute.xlu0 0
    %820 = vperm.xlu0 %819, %v764
    %v821 = vpop.permute.xlu0 %820
    %822 = vset.pattern.permute.xlu0 0
    %823 = vperm.xlu0 %822, %v766
    %v824 = vpop.permute.xlu0 %823
    %825 = vset.pattern.permute.xlu0 0
    %826 = vperm.xlu0 %825, %v768
    %v827 = vpop.permute.xlu0 %826
    %828 = vset.pattern.permute.xlu0 0
    %829 = vperm.xlu0 %828, %v770
    %v830 = vpop.permute.xlu0 %829
    %831 = vset.pattern.permute.xlu0 0
    %832 = vperm.xlu0 %831, %v772
    %v833 = vpop.permute.xlu0 %832
    %834 = vset.pattern.permute.xlu0 0
    %835 = vperm.xlu0 %834, %v774
    %v836 = vpop.permute.xlu0 %835
    %837 = vset.pattern.permute.xlu0 0
    %838 = vperm.xlu0 %837, %v776
    %v839 = vpop.permute.xlu0 %838
    %840 = vset.pattern.permute.xlu0 0
    %841 = vperm.xlu0 %840, %v778
    %v842 = vpop.permute.xlu0 %841
    %v843 = vlaneseq
    %v844 = vshrl.u32 %v843, 7
    %v845 = vsub.s32 %v554, %v844
    %v846 = vrot.slane %v797, %v845
    %v847 = vlaneseq
    %v848 = vshrl.u32 %v847, 7
    %v849 = vsub.s32 %v554, %v848
    %v850 = vrot.slane %v800, %v849
    %v851 = vlaneseq
    %v852 = vshrl.u32 %v851, 7
    %v853 = vsub.s32 %v554, %v852
    %v854 = vrot.slane %v803, %v853
    %v855 = vlaneseq
    %v856 = vshrl.u32 %v855, 7
    %v857 = vsub.s32 %v554, %v856
    %v858 = vrot.slane %v806, %v857
    %v859 = vlaneseq
    %v860 = vshrl.u32 %v859, 7
    %v861 = vsub.s32 %v554, %v860
    %v862 = vrot.slane %v809, %v861
    %v863 = vlaneseq
    %v864 = vshrl.u32 %v863, 7
    %v865 = vsub.s32 %v554, %v864
    %v866 = vrot.slane %v812, %v865
    %v867 = vlaneseq
    %v868 = vshrl.u32 %v867, 7
    %v869 = vsub.s32 %v554, %v868
    %v870 = vrot.slane %v815, %v869
    %v871 = vlaneseq
    %v872 = vshrl.u32 %v871, 7
    %v873 = vsub.s32 %v554, %v872
    %v874 = vrot.slane %v818, %v873
    %v875 = vlaneseq
    %v876 = vshrl.u32 %v875, 7
    %v877 = vsub.s32 %v554, %v876
    %v878 = vrot.slane %v821, %v877
    %v879 = vlaneseq
    %v880 = vshrl.u32 %v879, 7
    %v881 = vsub.s32 %v554, %v880
    %v882 = vrot.slane %v824, %v881
    %v883 = vlaneseq
    %v884 = vshrl.u32 %v883, 7
    %v885 = vsub.s32 %v554, %v884
    %v886 = vrot.slane %v827, %v885
    %v887 = vlaneseq
    %v888 = vshrl.u32 %v887, 7
    %v889 = vsub.s32 %v554, %v888
    %v890 = vrot.slane %v830, %v889
    %v891 = vlaneseq
    %v892 = vshrl.u32 %v891, 7
    %v893 = vsub.s32 %v554, %v892
    %v894 = vrot.slane %v833, %v893
    %v895 = vlaneseq
    %v896 = vshrl.u32 %v895, 7
    %v897 = vsub.s32 %v554, %v896
    %v898 = vrot.slane %v836, %v897
    %v899 = vlaneseq
    %v900 = vshrl.u32 %v899, 7
    %v901 = vsub.s32 %v554, %v900
    %v902 = vrot.slane %v839, %v901
    %v903 = vlaneseq
    %v904 = vshrl.u32 %v903, 7
    %v905 = vsub.s32 %v554, %v904
    %v906 = vrot.slane %v842, %v905
    %v907 = vsel %vm619, %v850, %v846
    %v908 = vsel %vm621, %v854, %v907
    %v909 = vsel %vm623, %v858, %v908
    %v910 = vsel %vm625, %v862, %v909
    %v911 = vsel %vm627, %v866, %v910
    %v912 = vsel %vm629, %v870, %v911
    %v913 = vsel %vm631, %v874, %v912
    %v914 = vsel %vm619, %v882, %v878
    %v915 = vsel %vm621, %v886, %v914
    %v916 = vsel %vm623, %v890, %v915
    %v917 = vsel %vm625, %v894, %v916
    %v918 = vsel %vm627, %v898, %v917
    %v919 = vsel %vm629, %v902, %v918
    %v920 = vsel %vm631, %v906, %v919
    %v923 = vsel %vm642, %v913, 0.0
    %924 = vadd.xlane.f32.xlu0 %v923
    %v925 = vpop.xlane.xlu0 %924
    %v926 = vsel %vm642, %v920, 0.0
    %927 = vadd.xlane.f32.xlu0 %v926
    %v928 = vpop.xlane.xlu0 %927
    %v929 = vrcp.pop %v925
    %v930 = vrcp.pop %v928
    %v933 = vlaneseq
    %v934 = vshrl.u32 %v933, 7
    %v935 = vsub.s32 0, %v934
    %v936 = vrot.slane %v929, %v935
    %v937 = vlaneseq
    %v938 = vshrl.u32 %v937, 7
    %v939 = vsub.s32 1, %v938
    %v940 = vrot.slane %v929, %v939
    %v941 = vlaneseq
    %v942 = vshrl.u32 %v941, 7
    %v943 = vsub.s32 2, %v942
    %v944 = vrot.slane %v929, %v943
    %v945 = vlaneseq
    %v946 = vshrl.u32 %v945, 7
    %v947 = vsub.s32 3, %v946
    %v948 = vrot.slane %v929, %v947
    %v949 = vlaneseq
    %v950 = vshrl.u32 %v949, 7
    %v951 = vsub.s32 4, %v950
    %v952 = vrot.slane %v929, %v951
    %v953 = vlaneseq
    %v954 = vshrl.u32 %v953, 7
    %v955 = vsub.s32 5, %v954
    %v956 = vrot.slane %v929, %v955
    %v957 = vlaneseq
    %v958 = vshrl.u32 %v957, 7
    %v959 = vsub.s32 6, %v958
    %v960 = vrot.slane %v929, %v959
    %v961 = vlaneseq
    %v962 = vshrl.u32 %v961, 7
    %v963 = vsub.s32 7, %v962
    %v964 = vrot.slane %v929, %v963
    %v965 = vlaneseq
    %v966 = vshrl.u32 %v965, 7
    %v967 = vsub.s32 0, %v966
    %v968 = vrot.slane %v930, %v967
    %v969 = vlaneseq
    %v970 = vshrl.u32 %v969, 7
    %v971 = vsub.s32 1, %v970
    %v972 = vrot.slane %v930, %v971
    %v973 = vlaneseq
    %v974 = vshrl.u32 %v973, 7
    %v975 = vsub.s32 2, %v974
    %v976 = vrot.slane %v930, %v975
    %v977 = vlaneseq
    %v978 = vshrl.u32 %v977, 7
    %v979 = vsub.s32 3, %v978
    %v980 = vrot.slane %v930, %v979
    %v981 = vlaneseq
    %v982 = vshrl.u32 %v981, 7
    %v983 = vsub.s32 4, %v982
    %v984 = vrot.slane %v930, %v983
    %v985 = vlaneseq
    %v986 = vshrl.u32 %v985, 7
    %v987 = vsub.s32 5, %v986
    %v988 = vrot.slane %v930, %v987
    %v989 = vlaneseq
    %v990 = vshrl.u32 %v989, 7
    %v991 = vsub.s32 6, %v990
    %v992 = vrot.slane %v930, %v991
    %v993 = vlaneseq
    %v994 = vshrl.u32 %v993, 7
    %v995 = vsub.s32 7, %v994
    %v996 = vrot.slane %v930, %v995
    %v1013 = vmul.f32 %v748, %v936
    %v1014 = vmul.f32 %v750, %v940
    %v1015 = vmul.f32 %v752, %v944
    %v1016 = vmul.f32 %v754, %v948
    %v1017 = vmul.f32 %v756, %v952
    %v1018 = vmul.f32 %v758, %v956
    %v1019 = vmul.f32 %v760, %v960
    %v1020 = vmul.f32 %v762, %v964
    %v1021 = vmul.f32 %v764, %v968
    %v1022 = vmul.f32 %v766, %v972
    %v1023 = vmul.f32 %v768, %v976
    %v1024 = vmul.f32 %v770, %v980
    %v1025 = vmul.f32 %v772, %v984
    %v1026 = vmul.f32 %v774, %v988
    %v1027 = vmul.f32 %v776, %v992
    %v1028 = vmul.f32 %v778, %v996
    %1030 = vset.pattern.permute.xlu0 0
    %1031 = vperm.xlu0 %1030, %v1013
    %v1032 = vpop.permute.xlu0 %1031
    %1035 = vset.pattern.permute.xlu0 0
    %1036 = vperm.xlu0 %1035, %v1014
    %v1037 = vpop.permute.xlu0 %1036
    %1040 = vset.pattern.permute.xlu0 0
    %1041 = vperm.xlu0 %1040, %v1015
    %v1042 = vpop.permute.xlu0 %1041
    %1045 = vset.pattern.permute.xlu0 0
    %1046 = vperm.xlu0 %1045, %v1016
    %v1047 = vpop.permute.xlu0 %1046
    %1050 = vset.pattern.permute.xlu0 0
    %1051 = vperm.xlu0 %1050, %v1017
    %v1052 = vpop.permute.xlu0 %1051
    %1055 = vset.pattern.permute.xlu0 0
    %1056 = vperm.xlu0 %1055, %v1018
    %v1057 = vpop.permute.xlu0 %1056
    %1060 = vset.pattern.permute.xlu0 0
    %1061 = vperm.xlu0 %1060, %v1019
    %v1062 = vpop.permute.xlu0 %1061
    %1065 = vset.pattern.permute.xlu0 0
    %1066 = vperm.xlu0 %1065, %v1020
    %v1067 = vpop.permute.xlu0 %1066
    %1070 = vset.pattern.permute.xlu0 0
    %1071 = vperm.xlu0 %1070, %v1021
    %v1072 = vpop.permute.xlu0 %1071
    %1075 = vset.pattern.permute.xlu0 0
    %1076 = vperm.xlu0 %1075, %v1022
    %v1077 = vpop.permute.xlu0 %1076
    %1080 = vset.pattern.permute.xlu0 0
    %1081 = vperm.xlu0 %1080, %v1023
    %v1082 = vpop.permute.xlu0 %1081
    %1085 = vset.pattern.permute.xlu0 0
    %1086 = vperm.xlu0 %1085, %v1024
    %v1087 = vpop.permute.xlu0 %1086
    %1090 = vset.pattern.permute.xlu0 0
    %1091 = vperm.xlu0 %1090, %v1025
    %v1092 = vpop.permute.xlu0 %1091
    %1095 = vset.pattern.permute.xlu0 0
    %1096 = vperm.xlu0 %1095, %v1026
    %v1097 = vpop.permute.xlu0 %1096
    %1100 = vset.pattern.permute.xlu0 0
    %1101 = vperm.xlu0 %1100, %v1027
    %v1102 = vpop.permute.xlu0 %1101
    %1105 = vset.pattern.permute.xlu0 0
    %1106 = vperm.xlu0 %1105, %v1028
    %v1107 = vpop.permute.xlu0 %1106
    %v1109 = vmul.f32 %v1032, %v161
    %v1110 = vmul.f32 %v1037, %v166
    %v1111 = vmul.f32 %v1042, %v171
    %v1112 = vmul.f32 %v1047, %v176
    %v1113 = vmul.f32 %v1052, %v181
    %v1114 = vmul.f32 %v1057, %v186
    %v1115 = vmul.f32 %v1062, %v191
    %v1116 = vmul.f32 %v1067, %v196
    %v1117 = vmul.f32 %v1072, %v201
    %v1118 = vmul.f32 %v1077, %v206
    %v1119 = vmul.f32 %v1082, %v211
    %v1120 = vmul.f32 %v1087, %v216
    %v1121 = vmul.f32 %v1092, %v221
    %v1122 = vmul.f32 %v1097, %v226
    %v1123 = vmul.f32 %v1102, %v231
    %v1124 = vmul.f32 %v1107, %v236
    %v1125 = vrot.slane %v1109, 4
    %v1126 = vadd.f32 %v1109, %v1125
    %v1127 = vrot.slane %v1126, 2
    %v1128 = vadd.f32 %v1126, %v1127
    %v1129 = vrot.slane %v1128, 1
    %v1130 = vadd.f32 %v1128, %v1129
    %v1131 = vrot.slane %v1110, 4
    %v1132 = vadd.f32 %v1110, %v1131
    %v1133 = vrot.slane %v1132, 2
    %v1134 = vadd.f32 %v1132, %v1133
    %v1135 = vrot.slane %v1134, 1
    %v1136 = vadd.f32 %v1134, %v1135
    %v1137 = vrot.slane %v1111, 4
    %v1138 = vadd.f32 %v1111, %v1137
    %v1139 = vrot.slane %v1138, 2
    %v1140 = vadd.f32 %v1138, %v1139
    %v1141 = vrot.slane %v1140, 1
    %v1142 = vadd.f32 %v1140, %v1141
    %v1143 = vrot.slane %v1112, 4
    %v1144 = vadd.f32 %v1112, %v1143
    %v1145 = vrot.slane %v1144, 2
    %v1146 = vadd.f32 %v1144, %v1145
    %v1147 = vrot.slane %v1146, 1
    %v1148 = vadd.f32 %v1146, %v1147
    %v1149 = vrot.slane %v1113, 4
    %v1150 = vadd.f32 %v1113, %v1149
    %v1151 = vrot.slane %v1150, 2
    %v1152 = vadd.f32 %v1150, %v1151
    %v1153 = vrot.slane %v1152, 1
    %v1154 = vadd.f32 %v1152, %v1153
    %v1155 = vrot.slane %v1114, 4
    %v1156 = vadd.f32 %v1114, %v1155
    %v1157 = vrot.slane %v1156, 2
    %v1158 = vadd.f32 %v1156, %v1157
    %v1159 = vrot.slane %v1158, 1
    %v1160 = vadd.f32 %v1158, %v1159
    %v1161 = vrot.slane %v1115, 4
    %v1162 = vadd.f32 %v1115, %v1161
    %v1163 = vrot.slane %v1162, 2
    %v1164 = vadd.f32 %v1162, %v1163
    %v1165 = vrot.slane %v1164, 1
    %v1166 = vadd.f32 %v1164, %v1165
    %v1167 = vrot.slane %v1116, 4
    %v1168 = vadd.f32 %v1116, %v1167
    %v1169 = vrot.slane %v1168, 2
    %v1170 = vadd.f32 %v1168, %v1169
    %v1171 = vrot.slane %v1170, 1
    %v1172 = vadd.f32 %v1170, %v1171
    %v1173 = vrot.slane %v1117, 4
    %v1174 = vadd.f32 %v1117, %v1173
    %v1175 = vrot.slane %v1174, 2
    %v1176 = vadd.f32 %v1174, %v1175
    %v1177 = vrot.slane %v1176, 1
    %v1178 = vadd.f32 %v1176, %v1177
    %v1179 = vrot.slane %v1118, 4
    %v1180 = vadd.f32 %v1118, %v1179
    %v1181 = vrot.slane %v1180, 2
    %v1182 = vadd.f32 %v1180, %v1181
    %v1183 = vrot.slane %v1182, 1
    %v1184 = vadd.f32 %v1182, %v1183
    %v1185 = vrot.slane %v1119, 4
    %v1186 = vadd.f32 %v1119, %v1185
    %v1187 = vrot.slane %v1186, 2
    %v1188 = vadd.f32 %v1186, %v1187
    %v1189 = vrot.slane %v1188, 1
    %v1190 = vadd.f32 %v1188, %v1189
    %v1191 = vrot.slane %v1120, 4
    %v1192 = vadd.f32 %v1120, %v1191
    %v1193 = vrot.slane %v1192, 2
    %v1194 = vadd.f32 %v1192, %v1193
    %v1195 = vrot.slane %v1194, 1
    %v1196 = vadd.f32 %v1194, %v1195
    %v1197 = vrot.slane %v1121, 4
    %v1198 = vadd.f32 %v1121, %v1197
    %v1199 = vrot.slane %v1198, 2
    %v1200 = vadd.f32 %v1198, %v1199
    %v1201 = vrot.slane %v1200, 1
    %v1202 = vadd.f32 %v1200, %v1201
    %v1203 = vrot.slane %v1122, 4
    %v1204 = vadd.f32 %v1122, %v1203
    %v1205 = vrot.slane %v1204, 2
    %v1206 = vadd.f32 %v1204, %v1205
    %v1207 = vrot.slane %v1206, 1
    %v1208 = vadd.f32 %v1206, %v1207
    %v1209 = vrot.slane %v1123, 4
    %v1210 = vadd.f32 %v1123, %v1209
    %v1211 = vrot.slane %v1210, 2
    %v1212 = vadd.f32 %v1210, %v1211
    %v1213 = vrot.slane %v1212, 1
    %v1214 = vadd.f32 %v1212, %v1213
    %v1215 = vrot.slane %v1124, 4
    %v1216 = vadd.f32 %v1124, %v1215
    %v1217 = vrot.slane %v1216, 2
    %v1218 = vadd.f32 %v1216, %v1217
    %v1219 = vrot.slane %v1218, 1
    %v1220 = vadd.f32 %v1218, %v1219
    %v1237 = vsel %vm619, %v1136, %v1130
    %v1238 = vsel %vm621, %v1142, %v1237
    %v1239 = vsel %vm623, %v1148, %v1238
    %v1240 = vsel %vm625, %v1154, %v1239
    %v1241 = vsel %vm627, %v1160, %v1240
    %v1242 = vsel %vm629, %v1166, %v1241
    %v1243 = vsel %vm631, %v1172, %v1242
    %v1244 = vsel %vm619, %v1184, %v1178
    %v1245 = vsel %vm621, %v1190, %v1244
    %v1246 = vsel %vm623, %v1196, %v1245
    %v1247 = vsel %vm625, %v1202, %v1246
    %v1248 = vsel %vm627, %v1208, %v1247
    %v1249 = vsel %vm629, %v1214, %v1248
    %v1250 = vsel %vm631, %v1220, %v1249
    %1253 = vst [vmem:[#allocation8] sm:$0xff] %v1243
    %1254 = vst [vmem:[#allocation8 + $0x8] sm:$0xff] %v1250
    // Predicated region
    $region30: #{tpu_custom_call.1} parent=1 // pred_check
      _
    $region31: #{tpu_custom_call.1} parent=1 // pred_check_branch
      %1256 = sbr.rel (0) target = $region33
    $region32: #{tpu_custom_call.1} parent=1 // pred_region
      %s1258 = ssub.s32 256, 256
      %1259 = vsyncadd [#allocation4], %s1258
      %s1260 = sshll.u32 [#allocation8], 4
      %s1261 = int_to_ptr.vmem [resolvable:$true] %s1260
      %1266 = dma.vmem_to_hbm [thread:$0]  %s1261, 256, %s4, [#allocation4], 128, 128, 8
    $region33: #{tpu_custom_call.1} parent=1 // pred_fallthru
      _
    // Predicated region
    $region34: #{tpu_custom_call.1} parent=1 // pred_check
      _
    $region35: #{tpu_custom_call.1} parent=1 // pred_check_branch
      %1268 = sbr.rel (0) target = $region37
    $region36: #{tpu_custom_call.1} parent=1 // pred_region
      %1269 = dma.done [#allocation4], 256
    $region37: #{tpu_custom_call.1} parent=1 // pred_fallthru
      _
    %1270 = vsyncpa [#allocation3], 1
    %1271 = vsyncpa [#allocation6], 1
    %1272 = vsyncpa [#allocation4], 1

</llo_original>
